<compile_context>
chip_gen: v7x
topology: tpu7x:2x2x1
jax: 0.10.0
libtpu: 0.0.40
codegen_flags: <defaults>
</compile_context>

<pallas_src>
import numpy as np
import jax
import jax.numpy as jnp
from jax.experimental import pallas as pl
from jax.experimental.pallas import tpu as pltpu

LANE = 128  # TPU lane width; the hidden dim is padded to this.


def _round_up(x, m):
    return ((x + m - 1) // m) * m


def _pad2d(a, rows, cols, dtype=jnp.float32):
    a = jnp.asarray(a, dtype=jnp.float32)
    r, c = a.shape
    return jnp.pad(a, ((0, rows - r), (0, cols - c))).astype(dtype)


# --------------------------------------------------------------------------- #
# Kernel: one batch tile through all four layers; weights stay VMEM-resident. #
# --------------------------------------------------------------------------- #
def fnn_kernel(x_ref,
               w1_ref, b1_ref,
               w2_ref, b2_ref,
               w3_ref, b3_ref,
               w4_ref, b4_ref,
               o_ref):
    # The scale n*a1 has been folded into the weights/biases by prepare_params.
    cdt = w1_ref.dtype                       # MXU input dtype (f32 or bf16)
    x = x_ref[...].astype(cdt)
    h = jnp.tanh(jnp.dot(x, w1_ref[...],
                         preferred_element_type=jnp.float32) + b1_ref[...])
    h = jnp.tanh(jnp.dot(h.astype(cdt), w2_ref[...],
                         preferred_element_type=jnp.float32) + b2_ref[...])
    h = jnp.tanh(jnp.dot(h.astype(cdt), w3_ref[...],
                         preferred_element_type=jnp.float32) + b3_ref[...])
    o_ref[...] = (jnp.dot(h.astype(cdt), w4_ref[...],
                          preferred_element_type=jnp.float32) + b4_ref[...])


def prepare_params(params, scale, *, dot_dtype=jnp.float32):
    """One-time (per parameter update) prep, hoisted out of the forward pass:
    fold scale = n*a1 into weights/biases and pad the hidden dim to a lane
    multiple.  Weights are stored in `dot_dtype` (bf16 recommended on v6e/v7x);
    biases stay f32 since they are added to the f32 MXU accumulator."""
    D_in, H = params["w1"].shape
    D_out = params["w4"].shape[1]
    Hp = _round_up(H, LANE)
    s = jnp.float32(scale)
    return dict(
        D_in=D_in, D_out=D_out, Hp=Hp,
        w1=_pad2d(params["w1"] * s, D_in, Hp, dot_dtype),
        b1=_pad2d(params["b1"] * s, 1, Hp),
        w2=_pad2d(params["w2"] * s, Hp, Hp, dot_dtype),
        b2=_pad2d(params["b2"] * s, 1, Hp),
        w3=_pad2d(params["w3"] * s, Hp, Hp, dot_dtype),
        b3=_pad2d(params["b3"] * s, 1, Hp),
        w4=_pad2d(params["w4"] * s, Hp, D_out, dot_dtype),
        b4=_pad2d(params["b4"] * s, 1, D_out),
    )


def _default_tb(B):
    Bp8 = _round_up(max(B, 1), 8)
    tb = min(2048, Bp8)
    # v7x has 2 TensorCores; the "parallel" batch axis only shards across them
    # if the grid has >= 2 steps, so split moderately large batches in two.
    if Bp8 >= 1024 and tb >= Bp8:
        tb = _round_up(pl.cdiv(Bp8, 2), 8)
    return tb


def fnn_forward(x, prepped, *, tb=None):
    """x: (B, D_in) f32.  prepped: output of prepare_params()."""
    B, D_in = x.shape
    assert D_in == prepped["D_in"]
    D_out, Hp = prepped["D_out"], prepped["Hp"]

    if tb is None:
        tb = _default_tb(B)
    tb = max(8, _round_up(min(tb, _round_up(B, 8)), 8))
    Bp = _round_up(B, tb)

    x = x.astype(jnp.float32)
    if Bp != B:
        x = jnp.pad(x, ((0, Bp - B), (0, 0)))   # pad rows only; columns stay D_in

    grid = (Bp // tb,)
    const = lambda i: (0, 0)   # weights/biases: same block every step -> VMEM-resident

    flops = 2 * Bp * (D_in * Hp + 2 * Hp * Hp + Hp * D_out)
    transcendentals = 3 * Bp * Hp
    wbytes = sum(int(np.prod(prepped[k].shape)) * prepped[k].dtype.itemsize
                 for k in ("w1", "b1", "w2", "b2", "w3", "b3", "w4", "b4"))
    bytes_accessed = 4 * Bp * (D_in + D_out) + wbytes

    out = pl.pallas_call(
        fnn_kernel,
        out_shape=jax.ShapeDtypeStruct((Bp, D_out), jnp.float32),
        grid=grid,
        in_specs=[
            pl.BlockSpec((tb, D_in), lambda i: (i, 0)),       # x tile, unpadded lanes
            pl.BlockSpec((D_in, Hp), const), pl.BlockSpec((1, Hp), const),
            pl.BlockSpec((Hp, Hp), const),   pl.BlockSpec((1, Hp), const),
            pl.BlockSpec((Hp, Hp), const),   pl.BlockSpec((1, Hp), const),
            pl.BlockSpec((Hp, D_out), const), pl.BlockSpec((1, D_out), const),
        ],
        out_specs=pl.BlockSpec((tb, D_out), lambda i: (i, 0)),  # unpadded output
        compiler_params=pltpu.CompilerParams(
            dimension_semantics=("parallel",)),
        cost_estimate=pl.CostEstimate(flops=flops,
                                      transcendentals=transcendentals,
                                      bytes_accessed=bytes_accessed),
    )(x, prepped["w1"], prepped["b1"], prepped["w2"], prepped["b2"],
      prepped["w3"], prepped["b3"], prepped["w4"], prepped["b4"])

    return out if Bp == B else out[:B]


def init_params(key, D_in, H, D_out):
    """Deterministic init matching the PyTorch __init__ (normal with given stds)."""
    ks = jax.random.split(key, 8)

    def nrm(k, shape, std):
        return jax.random.normal(k, shape, dtype=jnp.float32) * std

    # PyTorch linear weights are (out, in); we store transposed (in, out).
    w1 = nrm(ks[0], (H, D_in), np.sqrt(2.0 / (D_in + H))).T
    w2 = nrm(ks[1], (H, H), np.sqrt(2.0 / (H + H))).T
    w3 = nrm(ks[2], (H, H), np.sqrt(2.0 / (H + H))).T
    w4 = nrm(ks[3], (D_out, H), np.sqrt(2.0 / (H + D_out))).T
    b1 = nrm(ks[4], (1, H), 1.0)
    b2 = nrm(ks[5], (1, H), 1.0)
    b3 = nrm(ks[6], (1, H), 1.0)
    b4 = nrm(ks[7], (1, D_out), 1.0)
    return {"w1": w1, "b1": b1, "w2": w2, "b2": b2,
            "w3": w3, "b3": b3, "w4": w4, "b4": b4}


def fnn_reference(x, p, scale):
    y1 = jnp.tanh(scale * (x @ p["w1"] + p["b1"]))
    y2 = jnp.tanh(scale * (y1 @ p["w2"] + p["b2"]))
    y3 = jnp.tanh(scale * (y2 @ p["w3"] + p["b3"]))
    return scale * (y3 @ p["w4"] + p["b4"])


if __name__ == "__main__":
    key = jax.random.PRNGKey(0)
    k_x, k_p, k_x2 = jax.random.split(key, 3)

    B, D_in, H, D_out = 8, 16, 32, 8
    x = jax.random.normal(k_x, (B, D_in), dtype=jnp.float32)
    params = init_params(k_p, D_in, H, D_out)

    # a1 initialized to 0.1; n = 1 / a1_init = 10.0  ->  scale = n * a1 = 1.0
    n = 1.0 / 0.1

    # --- test 1: module as initialized (scale = 1.0), f32 MXU path -----------
    scale = float(n * 0.1)
    prepped = prepare_params(params, scale)
    out = jax.block_until_ready(fnn_forward(x, prepped))
    ref = fnn_reference(x, params, scale)
    np.testing.assert_allclose(np.asarray(out), np.asarray(ref),
                               rtol=1e-5, atol=1e-5)

    # --- test 2: a1 drifted (scale != 1), multi-step grid + row padding ------
    scale2 = float(n * 0.23)
    B2 = 100
    x2 = jax.random.normal(k_x2, (B2, D_in), dtype=jnp.float32)
    prepped2 = prepare_params(params, scale2)
    out2 = jax.block_until_ready(fnn_forward(x2, prepped2, tb=64))
    ref2 = fnn_reference(x2, params, scale2)
    np.testing.assert_allclose(np.asarray(out2), np.asarray(ref2),
                               rtol=1e-5, atol=1e-5)

    # --- test 3: bf16 MXU inputs (v6e/v7x recommendation), f32 accumulate ----
    prepped_bf16 = prepare_params(params, scale, dot_dtype=jnp.bfloat16)
    out_bf16 = jax.block_until_ready(fnn_forward(x, prepped_bf16))
    np.testing.assert_allclose(np.asarray(out_bf16), np.asarray(ref),
                               rtol=1e-1, atol=1e-1)

    print("KERNEL_OK")
</pallas_src>

<mosaic_0001>
module attributes {stable_mosaic.version = 11 : i64} {
  func.func @fnn_kernel(%arg0: i32, %arg1: memref<8x16xf32, #tpu.memory_space<vmem>>, %arg2: memref<16x128xf32, #tpu.memory_space<vmem>>, %arg3: memref<1x128xf32, #tpu.memory_space<vmem>>, %arg4: memref<128x128xf32, #tpu.memory_space<vmem>>, %arg5: memref<1x128xf32, #tpu.memory_space<vmem>>, %arg6: memref<128x128xf32, #tpu.memory_space<vmem>>, %arg7: memref<1x128xf32, #tpu.memory_space<vmem>>, %arg8: memref<128x8xf32, #tpu.memory_space<vmem>>, %arg9: memref<1x8xf32, #tpu.memory_space<vmem>>, %arg10: memref<8x8xf32, #tpu.memory_space<vmem>>) attributes {dimension_semantics = [#tpu.dimension_semantics<parallel>], iteration_bounds = array<i64: 1>, scalar_prefetch = 0 : i64, scratch_operands = 0 : i64, tpu.core_type = #tpu.core_type<tc>, window_params = [{transform_indices = @transform_0, window_bounds = array<i64: 8, 16>}, {pipeline_mode = #tpu.pipeline_mode<synchronous>, transform_indices = @transform_1, window_bounds = array<i64: 16, 128>}, {pipeline_mode = #tpu.pipeline_mode<synchronous>, transform_indices = @transform_2, window_bounds = array<i64: 1, 128>}, {pipeline_mode = #tpu.pipeline_mode<synchronous>, transform_indices = @transform_3, window_bounds = array<i64: 128, 128>}, {pipeline_mode = #tpu.pipeline_mode<synchronous>, transform_indices = @transform_4, window_bounds = array<i64: 1, 128>}, {pipeline_mode = #tpu.pipeline_mode<synchronous>, transform_indices = @transform_5, window_bounds = array<i64: 128, 128>}, {pipeline_mode = #tpu.pipeline_mode<synchronous>, transform_indices = @transform_6, window_bounds = array<i64: 1, 128>}, {pipeline_mode = #tpu.pipeline_mode<synchronous>, transform_indices = @transform_7, window_bounds = array<i64: 128, 8>}, {pipeline_mode = #tpu.pipeline_mode<synchronous>, transform_indices = @transform_8, window_bounds = array<i64: 1, 8>}, {transform_indices = @transform_9, window_bounds = array<i64: 8, 8>}]} {
    %c0 = arith.constant 0 : index
    %c0_0 = arith.constant 0 : index
    %0 = vector.load %arg1[%c0, %c0_0] : memref<8x16xf32, #tpu.memory_space<vmem>>, vector<8x16xf32>
    %c0_1 = arith.constant 0 : index
    %c0_2 = arith.constant 0 : index
    %1 = vector.load %arg2[%c0_1, %c0_2] : memref<16x128xf32, #tpu.memory_space<vmem>>, vector<16x128xf32>
    %cst = arith.constant dense<0.000000e+00> : vector<8x128xf32>
    %2 = tpu.matmul %0, %1, %cst {dimension_numbers = #tpu.dot_dimension_numbers<[1], [0], [0], [1], [0, 0, 1, 1], [], []>} : vector<8x16xf32>, vector<16x128xf32>, vector<8x128xf32> -> vector<8x128xf32>
    %c0_3 = arith.constant 0 : index
    %c0_4 = arith.constant 0 : index
    %3 = vector.load %arg3[%c0_3, %c0_4] : memref<1x128xf32, #tpu.memory_space<vmem>>, vector<1x128xf32>
    %4 = vector.broadcast %3 : vector<1x128xf32> to vector<8x128xf32>
    %5 = arith.addf %2, %4 : vector<8x128xf32>
    %6 = math.tanh %5 : vector<8x128xf32>
    %c0_5 = arith.constant 0 : index
    %c0_6 = arith.constant 0 : index
    %7 = vector.load %arg4[%c0_5, %c0_6] : memref<128x128xf32, #tpu.memory_space<vmem>>, vector<128x128xf32>
    %cst_7 = arith.constant dense<0.000000e+00> : vector<8x128xf32>
    %8 = tpu.matmul %6, %7, %cst_7 {dimension_numbers = #tpu.dot_dimension_numbers<[1], [0], [0], [1], [0, 0, 1, 1], [], []>} : vector<8x128xf32>, vector<128x128xf32>, vector<8x128xf32> -> vector<8x128xf32>
    %c0_8 = arith.constant 0 : index
    %c0_9 = arith.constant 0 : index
    %9 = vector.load %arg5[%c0_8, %c0_9] : memref<1x128xf32, #tpu.memory_space<vmem>>, vector<1x128xf32>
    %10 = vector.broadcast %9 : vector<1x128xf32> to vector<8x128xf32>
    %11 = arith.addf %8, %10 : vector<8x128xf32>
    %12 = math.tanh %11 : vector<8x128xf32>
    %c0_10 = arith.constant 0 : index
    %c0_11 = arith.constant 0 : index
    %13 = vector.load %arg6[%c0_10, %c0_11] : memref<128x128xf32, #tpu.memory_space<vmem>>, vector<128x128xf32>
    %cst_12 = arith.constant dense<0.000000e+00> : vector<8x128xf32>
    %14 = tpu.matmul %12, %13, %cst_12 {dimension_numbers = #tpu.dot_dimension_numbers<[1], [0], [0], [1], [0, 0, 1, 1], [], []>} : vector<8x128xf32>, vector<128x128xf32>, vector<8x128xf32> -> vector<8x128xf32>
    %c0_13 = arith.constant 0 : index
    %c0_14 = arith.constant 0 : index
    %15 = vector.load %arg7[%c0_13, %c0_14] : memref<1x128xf32, #tpu.memory_space<vmem>>, vector<1x128xf32>
    %16 = vector.broadcast %15 : vector<1x128xf32> to vector<8x128xf32>
    %17 = arith.addf %14, %16 : vector<8x128xf32>
    %18 = math.tanh %17 : vector<8x128xf32>
    %c0_15 = arith.constant 0 : index
    %c0_16 = arith.constant 0 : index
    %19 = vector.load %arg8[%c0_15, %c0_16] : memref<128x8xf32, #tpu.memory_space<vmem>>, vector<128x8xf32>
    %cst_17 = arith.constant dense<0.000000e+00> : vector<8x8xf32>
    %20 = tpu.matmul %18, %19, %cst_17 {dimension_numbers = #tpu.dot_dimension_numbers<[1], [0], [0], [1], [0, 0, 1, 1], [], []>} : vector<8x128xf32>, vector<128x8xf32>, vector<8x8xf32> -> vector<8x8xf32>
    %c0_18 = arith.constant 0 : index
    %c0_19 = arith.constant 0 : index
    %21 = vector.load %arg9[%c0_18, %c0_19] : memref<1x8xf32, #tpu.memory_space<vmem>>, vector<1x8xf32>
    %22 = vector.broadcast %21 : vector<1x8xf32> to vector<8x8xf32>
    %23 = arith.addf %20, %22 : vector<8x8xf32>
    %c0_20 = arith.constant 0 : index
    %c0_21 = arith.constant 0 : index
    %24 = vector.load %arg10[%c0_20, %c0_21] : memref<8x8xf32, #tpu.memory_space<vmem>>, vector<8x8xf32>
    tpu.vector_store %arg10[%c0_20, %c0_21], %23 {strides = array<i32>} : memref<8x8xf32, #tpu.memory_space<vmem>>, vector<8x8xf32>,
    return
  }
  func.func @transform_0(%arg0: i32) -> (i32, i32) {
    %c0_i32 = arith.constant 0 : i32
    %c0_i32_0 = arith.constant 0 : i32
    return %arg0, %c0_i32 : i32, i32
  }
  func.func @transform_1(%arg0: i32) -> (i32, i32) {
    %c0_i32 = arith.constant 0 : i32
    %c0_i32_0 = arith.constant 0 : i32
    %c0_i32_1 = arith.constant 0 : i32
    return %c0_i32, %c0_i32_0 : i32, i32
  }
  func.func @transform_2(%arg0: i32) -> (i32, i32) {
    %c0_i32 = arith.constant 0 : i32
    %c0_i32_0 = arith.constant 0 : i32
    %c0_i32_1 = arith.constant 0 : i32
    return %c0_i32, %c0_i32_0 : i32, i32
  }
  func.func @transform_3(%arg0: i32) -> (i32, i32) {
    %c0_i32 = arith.constant 0 : i32
    %c0_i32_0 = arith.constant 0 : i32
    %c0_i32_1 = arith.constant 0 : i32
    return %c0_i32, %c0_i32_0 : i32, i32
  }
  func.func @transform_4(%arg0: i32) -> (i32, i32) {
    %c0_i32 = arith.constant 0 : i32
    %c0_i32_0 = arith.constant 0 : i32
    %c0_i32_1 = arith.constant 0 : i32
    return %c0_i32, %c0_i32_0 : i32, i32
  }
  func.func @transform_5(%arg0: i32) -> (i32, i32) {
    %c0_i32 = arith.constant 0 : i32
    %c0_i32_0 = arith.constant 0 : i32
    %c0_i32_1 = arith.constant 0 : i32
    return %c0_i32, %c0_i32_0 : i32, i32
  }
  func.func @transform_6(%arg0: i32) -> (i32, i32) {
    %c0_i32 = arith.constant 0 : i32
    %c0_i32_0 = arith.constant 0 : i32
    %c0_i32_1 = arith.constant 0 : i32
    return %c0_i32, %c0_i32_0 : i32, i32
  }
  func.func @transform_7(%arg0: i32) -> (i32, i32) {
    %c0_i32 = arith.constant 0 : i32
    %c0_i32_0 = arith.constant 0 : i32
    %c0_i32_1 = arith.constant 0 : i32
    return %c0_i32, %c0_i32_0 : i32, i32
  }
  func.func @transform_8(%arg0: i32) -> (i32, i32) {
    %c0_i32 = arith.constant 0 : i32
    %c0_i32_0 = arith.constant 0 : i32
    %c0_i32_1 = arith.constant 0 : i32
    return %c0_i32, %c0_i32_0 : i32, i32
  }
  func.func @transform_9(%arg0: i32) -> (i32, i32) {
    %c0_i32 = arith.constant 0 : i32
    %c0_i32_0 = arith.constant 0 : i32
    return %arg0, %c0_i32 : i32, i32
  }
}

</mosaic_0001>

<llo_original>
// kernel: tpu_custom_call.1
$region0: #{tpu_custom_call.1}
  #allocation0 [shape = 'u32[]', space=smem, size = 0x4, offset = 0x4, fixed_abs, tag = 'smem constant byte address 0x4 - core index']
  #allocation1 [shape = 'u32[144,128]{1,0:T(1,128)}', space=vmem, size = 0x12000, scoped, tag = 'internal scratch']
  %s0 = inlined_call_operand.hbm [shape: f32[8,16], index: 0, kind: input, shape index: {}]
  %s1 = inlined_call_operand.vmem [shape: f32[16,128], index: 1, kind: input, shape index: {}]
  %s2 = inlined_call_operand.vmem [shape: f32[1,128], index: 2, kind: input, shape index: {}]
  %s3 = inlined_call_operand.vmem [shape: f32[128,128], index: 3, kind: input, shape index: {}]
  %s4 = inlined_call_operand.vmem [shape: f32[1,128], index: 4, kind: input, shape index: {}]
  %s5 = inlined_call_operand.hbm [shape: f32[128,128], index: 5, kind: input, shape index: {}]
  %s6 = inlined_call_operand.vmem [shape: f32[1,128], index: 6, kind: input, shape index: {}]
  %s7 = inlined_call_operand.vmem [shape: f32[128,8], index: 7, kind: input, shape index: {}]
  %s8 = inlined_call_operand.vmem [shape: f32[1,8], index: 8, kind: input, shape index: {}]
  %s9 = inlined_call_operand.hbm [shape: f32[8,8], index: 9, kind: output, shape index: {}]
  %s10 = sld [smem:[#allocation0]]
  $region54: #{tpu_custom_call.1} parent=0
    _
  %s12 = ssub.s32 1, %s10
  %s13 = scalar_select 0, %s12, %s10
  $region1: #{tpu_custom_call.1} parent=0
    #allocation2 [shape = 'u8[4096]{0}', space=vmem, size = 0x1000, scoped, tag = 'input window, operand 0, single buffered']
    #allocation3 [shape = 's32[1]{0}', space=sflag, size = 0x4, scoped, tag = 'scoped memory for tpu_custom_call.1']
    #allocation4 [shape = 's32[1]{0}', space=sflag, size = 0x4, scoped, tag = 'scoped memory for tpu_custom_call.1']
    #allocation5 [shape = 'u8[65536]{0}', space=vmem, size = 0x10000, scoped, tag = 'input window, operand 5, single buffered']
    #allocation6 [shape = 's32[1]{0}', space=sflag, size = 0x4, scoped, tag = 'scoped memory for tpu_custom_call.1']
    #allocation7 [shape = 'u8[4096]{0}', space=vmem, size = 0x1000, scoped, tag = 'output window, operand 0, single buffered']
    %14 = vsyncpa [#allocation3], 0
    %15 = vsyncpa [#allocation6], 0
    %16 = vsyncpa [#allocation4], 0
    // Predicated region
    $region2: #{tpu_custom_call.1} parent=1 // pred_check
      _
    $region3: #{tpu_custom_call.1} parent=1 // pred_check_branch
      %18 = sbr.rel (0) target = $region5
    $region4: #{tpu_custom_call.1} parent=1 // pred_region
      %s20 = ssub.s32 128, 128
      %21 = vsyncadd [#allocation3], %s20
      %s23 = sshll.u32 [#allocation2], 4
      %s24 = int_to_ptr.vmem [resolvable:$true] %s23
      %26 = dma.hbm_to_vmem [thread:$0]  %s0, 128, %s24, [#allocation3]
    $region5: #{tpu_custom_call.1} parent=1 // pred_fallthru
      _
    // Predicated region
    $region6: #{tpu_custom_call.1} parent=1 // pred_check
      _
    $region7: #{tpu_custom_call.1} parent=1 // pred_check_branch
      %28 = sbr.rel (0) target = $region9
    $region8: #{tpu_custom_call.1} parent=1 // pred_region
      _
    $region9: #{tpu_custom_call.1} parent=1 // pred_fallthru
      _
    // Predicated region
    $region10: #{tpu_custom_call.1} parent=1 // pred_check
      _
    $region11: #{tpu_custom_call.1} parent=1 // pred_check_branch
      %30 = sbr.rel (0) target = $region13
    $region12: #{tpu_custom_call.1} parent=1 // pred_region
      _
    $region13: #{tpu_custom_call.1} parent=1 // pred_fallthru
      _
    // Predicated region
    $region14: #{tpu_custom_call.1} parent=1 // pred_check
      _
    $region15: #{tpu_custom_call.1} parent=1 // pred_check_branch
      %32 = sbr.rel (0) target = $region17
    $region16: #{tpu_custom_call.1} parent=1 // pred_region
      _
    $region17: #{tpu_custom_call.1} parent=1 // pred_fallthru
      _
    // Predicated region
    $region18: #{tpu_custom_call.1} parent=1 // pred_check
      _
    $region19: #{tpu_custom_call.1} parent=1 // pred_check_branch
      %34 = sbr.rel (0) target = $region21
    $region20: #{tpu_custom_call.1} parent=1 // pred_region
      _
    $region21: #{tpu_custom_call.1} parent=1 // pred_fallthru
      _
    // Predicated region
    $region22: #{tpu_custom_call.1} parent=1 // pred_check
      _
    $region23: #{tpu_custom_call.1} parent=1 // pred_check_branch
      %36 = sbr.rel (0) target = $region25
    $region24: #{tpu_custom_call.1} parent=1 // pred_region
      %s38 = ssub.s32 2048, 2048
      %39 = vsyncadd [#allocation6], %s38
      %s40 = sshll.u32 [#allocation5], 4
      %s41 = int_to_ptr.vmem [resolvable:$true] %s40
      %46 = dma.hbm_to_vmem [thread:$0]  %s5, 2048, %s41, [#allocation6], 128, 128, 8
    $region25: #{tpu_custom_call.1} parent=1 // pred_fallthru
      _
    // Predicated region
    $region26: #{tpu_custom_call.1} parent=1 // pred_check
      _
    $region27: #{tpu_custom_call.1} parent=1 // pred_check_branch
      %48 = sbr.rel (0) target = $region29
    $region28: #{tpu_custom_call.1} parent=1 // pred_region
      _
    $region29: #{tpu_custom_call.1} parent=1 // pred_fallthru
      _
    // Predicated region
    $region30: #{tpu_custom_call.1} parent=1 // pred_check
      _
    $region31: #{tpu_custom_call.1} parent=1 // pred_check_branch
      %50 = sbr.rel (0) target = $region33
    $region32: #{tpu_custom_call.1} parent=1 // pred_region
      _
    $region33: #{tpu_custom_call.1} parent=1 // pred_fallthru
      _
    // Predicated region
    $region34: #{tpu_custom_call.1} parent=1 // pred_check
      _
    $region35: #{tpu_custom_call.1} parent=1 // pred_check_branch
      %52 = sbr.rel (0) target = $region37
    $region36: #{tpu_custom_call.1} parent=1 // pred_region
      _
    $region37: #{tpu_custom_call.1} parent=1 // pred_fallthru
      _
    // Predicated region
    $region38: #{tpu_custom_call.1} parent=1 // pred_check
      _
    $region39: #{tpu_custom_call.1} parent=1 // pred_check_branch
      %54 = sbr.rel (0) target = $region41
    $region40: #{tpu_custom_call.1} parent=1 // pred_region
      %55 = dma.done [#allocation3], 128
    $region41: #{tpu_custom_call.1} parent=1 // pred_fallthru
      _
    // Predicated region
    $region42: #{tpu_custom_call.1} parent=1 // pred_check
      _
    $region43: #{tpu_custom_call.1} parent=1 // pred_check_branch
      %57 = sbr.rel (0) target = $region45
    $region44: #{tpu_custom_call.1} parent=1 // pred_region
      %58 = dma.done [#allocation6], 2048
    $region45: #{tpu_custom_call.1} parent=1 // pred_fallthru
      _
    %v59 = vld [vmem:[#allocation2] sm:$0xff]
    %v60 = vld [vmem:[%s1] sm:$0xff]
    %v61 = vld [vmem:[%s1 + $0x8] sm:$0xff]
    %v62 = vld [vmem:[%s2] sm:$0x1]
    %v64 = vlaneseq
    %v65 = vshrl.u32 %v64, 7
    %v66 = vsub.s32 0, %v65
    %v67 = vrot.slane %v62, %v66
    %vm69 = vcmask 130048
    %v71 = vsel %vm69, %v59, 0
    %73 = vmatprep.subr.mxu0 0.0
    %74 = vmatpush1.msra.mxu0 %v60
    %75 = vmatprep.subr.mxu0 0.0
    %76 = vmatpush1.msra.mxu0 %v61
    %77 = vmatprep.subr.mxu0 0.0
    %78 = vmatpush1.msra.mxu0 0.0
    %79 = vmatprep.subr.mxu0 0.0
    %80 = vmatpush1.msra.mxu0 0.0
    %81 = vmatprep.subr.mxu0 0.0
    %82 = vmatpush1.msra.mxu0 0.0
    %83 = vmatprep.subr.mxu0 0.0
    %84 = vmatpush1.msra.mxu0 0.0
    %85 = vmatprep.subr.mxu0 0.0
    %86 = vmatpush1.msra.mxu0 0.0
    %87 = vmatprep.subr.mxu0 0.0
    %88 = vmatpush1.msra.mxu0 0.0
    %89 = vmatprep.subr.mxu0 0.0
    %90 = vmatpush1.msra.mxu0 0.0
    %91 = vmatprep.subr.mxu0 0.0
    %92 = vmatpush1.msra.mxu0 0.0
    %93 = vmatprep.subr.mxu0 0.0
    %94 = vmatpush1.msra.mxu0 0.0
    %95 = vmatprep.subr.mxu0 0.0
    %96 = vmatpush1.msra.mxu0 0.0
    %97 = vmatprep.subr.mxu0 0.0
    %98 = vmatpush1.msra.mxu0 0.0
    %99 = vmatprep.subr.mxu0 0.0
    %100 = vmatpush1.msra.mxu0 0.0
    %101 = vmatprep.subr.mxu0 0.0
    %102 = vmatpush1.msra.mxu0 0.0
    %103 = vmatprep.subr.mxu0 0.0
    %104 = vmatpush1.msra.mxu0 0.0
    %105 = vmatprep.subr.mxu0 0.0
    %106 = vmatpush1.msra.mxu0 0.0
    %107 = vmatprep.subr.mxu0 0.0
    %108 = vmatpush1.msra.mxu0 0.0
    %109 = vmatprep.subr.mxu0 0.0
    %110 = vmatpush1.msra.mxu0 0.0
    %111 = vmatprep.subr.mxu0 0.0
    %112 = vmatpush1.msra.mxu0 0.0
    %113 = vmatprep.subr.mxu0 0.0
    %114 = vmatpush1.msra.mxu0 0.0
    %115 = vmatprep.subr.mxu0 0.0
    %116 = vmatpush1.msra.mxu0 0.0
    %117 = vmatprep.subr.mxu0 0.0
    %118 = vmatpush1.msra.mxu0 0.0
    %119 = vmatprep.subr.mxu0 0.0
    %120 = vmatpush1.msra.mxu0 0.0
    %121 = vmatprep.subr.mxu0 0.0
    %122 = vmatpush1.msra.mxu0 0.0
    %123 = vmatprep.subr.mxu0 0.0
    %124 = vmatpush1.msra.mxu0 0.0
    %125 = vmatprep.subr.mxu0 0.0
    %126 = vmatpush1.msra.mxu0 0.0
    %127 = vmatprep.subr.mxu0 0.0
    %128 = vmatpush1.msra.mxu0 0.0
    %129 = vmatprep.subr.mxu0 0.0
    %130 = vmatpush1.msra.mxu0 0.0
    %131 = vmatprep.subr.mxu0 0.0
    %132 = vmatpush1.msra.mxu0 0.0
    %133 = vmatprep.subr.mxu0 0.0
    %134 = vmatpush1.msra.mxu0 0.0
    %135 = vmatprep.subr.mxu0 0.0
    %136 = vmatpush1.msra.mxu0 0.0
    %137 = vmatprep.mubr.f32.mxu0 0.0
    %138 = vmatmul.mubr.f32.gmra.mrb[0].mxu0 %v71
    %v139 = vpop.f32.mrb[0].mxu0
    %v140 = vadd.f32 %v67, %v139
    %v141 = vpop.f32.mrb[0].mxu0
    %142 = vdwg.mxu0
    %v143 = vtanh.pop %v140
    %v144 = vld [vmem:[%s3] sm:$0xff]
    %v145 = vld [vmem:[%s3 + $0x8] sm:$0xff]
    %v146 = vld [vmem:[%s3 + $0x10] sm:$0xff]
    %v147 = vld [vmem:[%s3 + $0x18] sm:$0xff]
    %v148 = vld [vmem:[%s3 + $0x20] sm:$0xff]
    %v149 = vld [vmem:[%s3 + $0x28] sm:$0xff]
    %v150 = vld [vmem:[%s3 + $0x30] sm:$0xff]
    %v151 = vld [vmem:[%s3 + $0x38] sm:$0xff]
    %v152 = vld [vmem:[%s3 + $0x40] sm:$0xff]
    %v153 = vld [vmem:[%s3 + $0x48] sm:$0xff]
    %v154 = vld [vmem:[%s3 + $0x50] sm:$0xff]
    %v155 = vld [vmem:[%s3 + $0x58] sm:$0xff]
    %v156 = vld [vmem:[%s3 + $0x60] sm:$0xff]
    %v157 = vld [vmem:[%s3 + $0x68] sm:$0xff]
    %v158 = vld [vmem:[%s3 + $0x70] sm:$0xff]
    %v159 = vld [vmem:[%s3 + $0x78] sm:$0xff]
    %v160 = vld [vmem:[%s4] sm:$0x1]
    %v162 = vlaneseq
    %v163 = vshrl.u32 %v162, 7
    %v164 = vsub.s32 0, %v163
    %v165 = vrot.slane %v160, %v164
    %167 = vmatprep.subr.mxu0 0.0
    %168 = vmatpush1.msra.mxu0 %v144
    %169 = vmatprep.subr.mxu0 0.0
    %170 = vmatpush1.msra.mxu0 %v145
    %171 = vmatprep.subr.mxu0 0.0
    %172 = vmatpush1.msra.mxu0 %v146
    %173 = vmatprep.subr.mxu0 0.0
    %174 = vmatpush1.msra.mxu0 %v147
    %175 = vmatprep.subr.mxu0 0.0
    %176 = vmatpush1.msra.mxu0 %v148
    %177 = vmatprep.subr.mxu0 0.0
    %178 = vmatpush1.msra.mxu0 %v149
    %179 = vmatprep.subr.mxu0 0.0
    %180 = vmatpush1.msra.mxu0 %v150
    %181 = vmatprep.subr.mxu0 0.0
    %182 = vmatpush1.msra.mxu0 %v151
    %183 = vmatprep.subr.mxu0 0.0
    %184 = vmatpush1.msra.mxu0 %v152
    %185 = vmatprep.subr.mxu0 0.0
    %186 = vmatpush1.msra.mxu0 %v153
    %187 = vmatprep.subr.mxu0 0.0
    %188 = vmatpush1.msra.mxu0 %v154
    %189 = vmatprep.subr.mxu0 0.0
    %190 = vmatpush1.msra.mxu0 %v155
    %191 = vmatprep.subr.mxu0 0.0
    %192 = vmatpush1.msra.mxu0 %v156
    %193 = vmatprep.subr.mxu0 0.0
    %194 = vmatpush1.msra.mxu0 %v157
    %195 = vmatprep.subr.mxu0 0.0
    %196 = vmatpush1.msra.mxu0 %v158
    %197 = vmatprep.subr.mxu0 0.0
    %198 = vmatpush1.msra.mxu0 %v159
    %199 = vmatprep.subr.mxu0 0.0
    %200 = vmatpush1.msra.mxu0 0.0
    %201 = vmatprep.subr.mxu0 0.0
    %202 = vmatpush1.msra.mxu0 0.0
    %203 = vmatprep.subr.mxu0 0.0
    %204 = vmatpush1.msra.mxu0 0.0
    %205 = vmatprep.subr.mxu0 0.0
    %206 = vmatpush1.msra.mxu0 0.0
    %207 = vmatprep.subr.mxu0 0.0
    %208 = vmatpush1.msra.mxu0 0.0
    %209 = vmatprep.subr.mxu0 0.0
    %210 = vmatpush1.msra.mxu0 0.0
    %211 = vmatprep.subr.mxu0 0.0
    %212 = vmatpush1.msra.mxu0 0.0
    %213 = vmatprep.subr.mxu0 0.0
    %214 = vmatpush1.msra.mxu0 0.0
    %215 = vmatprep.subr.mxu0 0.0
    %216 = vmatpush1.msra.mxu0 0.0
    %217 = vmatprep.subr.mxu0 0.0
    %218 = vmatpush1.msra.mxu0 0.0
    %219 = vmatprep.subr.mxu0 0.0
    %220 = vmatpush1.msra.mxu0 0.0
    %221 = vmatprep.subr.mxu0 0.0
    %222 = vmatpush1.msra.mxu0 0.0
    %223 = vmatprep.subr.mxu0 0.0
    %224 = vmatpush1.msra.mxu0 0.0
    %225 = vmatprep.subr.mxu0 0.0
    %226 = vmatpush1.msra.mxu0 0.0
    %227 = vmatprep.subr.mxu0 0.0
    %228 = vmatpush1.msra.mxu0 0.0
    %229 = vmatprep.subr.mxu0 0.0
    %230 = vmatpush1.msra.mxu0 0.0
    %231 = vmatprep.mubr.f32.mxu0 0.0
    %232 = vmatmul.mubr.f32.gmra.mrb[0].mxu0 %v143
    %v233 = vpop.f32.mrb[0].mxu0
    %v234 = vadd.f32 %v165, %v233
    %v235 = vpop.f32.mrb[0].mxu0
    %236 = vdwg.mxu0
    %v237 = vtanh.pop %v234
    %v238 = vld [vmem:[#allocation5] sm:$0xff]
    %v239 = vld [vmem:[#allocation5 + $0x8] sm:$0xff]
    %v240 = vld [vmem:[#allocation5 + $0x10] sm:$0xff]
    %v241 = vld [vmem:[#allocation5 + $0x18] sm:$0xff]
    %v242 = vld [vmem:[#allocation5 + $0x20] sm:$0xff]
    %v243 = vld [vmem:[#allocation5 + $0x28] sm:$0xff]
    %v244 = vld [vmem:[#allocation5 + $0x30] sm:$0xff]
    %v245 = vld [vmem:[#allocation5 + $0x38] sm:$0xff]
    %v246 = vld [vmem:[#allocation5 + $0x40] sm:$0xff]
    %v247 = vld [vmem:[#allocation5 + $0x48] sm:$0xff]
    %v248 = vld [vmem:[#allocation5 + $0x50] sm:$0xff]
    %v249 = vld [vmem:[#allocation5 + $0x58] sm:$0xff]
    %v250 = vld [vmem:[#allocation5 + $0x60] sm:$0xff]
    %v251 = vld [vmem:[#allocation5 + $0x68] sm:$0xff]
    %v252 = vld [vmem:[#allocation5 + $0x70] sm:$0xff]
    %v253 = vld [vmem:[#allocation5 + $0x78] sm:$0xff]
    %v254 = vld [vmem:[%s6] sm:$0x1]
    %v256 = vlaneseq
    %v257 = vshrl.u32 %v256, 7
    %v258 = vsub.s32 0, %v257
    %v259 = vrot.slane %v254, %v258
    %261 = vmatprep.subr.mxu0 0.0
    %262 = vmatpush1.msra.mxu0 %v238
    %263 = vmatprep.subr.mxu0 0.0
    %264 = vmatpush1.msra.mxu0 %v239
    %265 = vmatprep.subr.mxu0 0.0
    %266 = vmatpush1.msra.mxu0 %v240
    %267 = vmatprep.subr.mxu0 0.0
    %268 = vmatpush1.msra.mxu0 %v241
    %269 = vmatprep.subr.mxu0 0.0
    %270 = vmatpush1.msra.mxu0 %v242
    %271 = vmatprep.subr.mxu0 0.0
    %272 = vmatpush1.msra.mxu0 %v243
    %273 = vmatprep.subr.mxu0 0.0
    %274 = vmatpush1.msra.mxu0 %v244
    %275 = vmatprep.subr.mxu0 0.0
    %276 = vmatpush1.msra.mxu0 %v245
    %277 = vmatprep.subr.mxu0 0.0
    %278 = vmatpush1.msra.mxu0 %v246
    %279 = vmatprep.subr.mxu0 0.0
    %280 = vmatpush1.msra.mxu0 %v247
    %281 = vmatprep.subr.mxu0 0.0
    %282 = vmatpush1.msra.mxu0 %v248
    %283 = vmatprep.subr.mxu0 0.0
    %284 = vmatpush1.msra.mxu0 %v249
    %285 = vmatprep.subr.mxu0 0.0
    %286 = vmatpush1.msra.mxu0 %v250
    %287 = vmatprep.subr.mxu0 0.0
    %288 = vmatpush1.msra.mxu0 %v251
    %289 = vmatprep.subr.mxu0 0.0
    %290 = vmatpush1.msra.mxu0 %v252
    %291 = vmatprep.subr.mxu0 0.0
    %292 = vmatpush1.msra.mxu0 %v253
    %293 = vmatprep.subr.mxu0 0.0
    %294 = vmatpush1.msra.mxu0 0.0
    %295 = vmatprep.subr.mxu0 0.0
    %296 = vmatpush1.msra.mxu0 0.0
    %297 = vmatprep.subr.mxu0 0.0
    %298 = vmatpush1.msra.mxu0 0.0
    %299 = vmatprep.subr.mxu0 0.0
    %300 = vmatpush1.msra.mxu0 0.0
    %301 = vmatprep.subr.mxu0 0.0
    %302 = vmatpush1.msra.mxu0 0.0
    %303 = vmatprep.subr.mxu0 0.0
    %304 = vmatpush1.msra.mxu0 0.0
    %305 = vmatprep.subr.mxu0 0.0
    %306 = vmatpush1.msra.mxu0 0.0
    %307 = vmatprep.subr.mxu0 0.0
    %308 = vmatpush1.msra.mxu0 0.0
    %309 = vmatprep.subr.mxu0 0.0
    %310 = vmatpush1.msra.mxu0 0.0
    %311 = vmatprep.subr.mxu0 0.0
    %312 = vmatpush1.msra.mxu0 0.0
    %313 = vmatprep.subr.mxu0 0.0
    %314 = vmatpush1.msra.mxu0 0.0
    %315 = vmatprep.subr.mxu0 0.0
    %316 = vmatpush1.msra.mxu0 0.0
    %317 = vmatprep.subr.mxu0 0.0
    %318 = vmatpush1.msra.mxu0 0.0
    %319 = vmatprep.subr.mxu0 0.0
    %320 = vmatpush1.msra.mxu0 0.0
    %321 = vmatprep.subr.mxu0 0.0
    %322 = vmatpush1.msra.mxu0 0.0
    %323 = vmatprep.subr.mxu0 0.0
    %324 = vmatpush1.msra.mxu0 0.0
    %325 = vmatprep.mubr.f32.mxu0 0.0
    %326 = vmatmul.mubr.f32.gmra.mrb[0].mxu0 %v237
    %v327 = vpop.f32.mrb[0].mxu0
    %v328 = vadd.f32 %v259, %v327
    %v329 = vpop.f32.mrb[0].mxu0
    %330 = vdwg.mxu0
    %v331 = vtanh.pop %v328
    %v332 = vld [vmem:[%s7] sm:$0xff]
    %v333 = vld [vmem:[%s7 + $0x8] sm:$0xff]
    %v334 = vld [vmem:[%s7 + $0x10] sm:$0xff]
    %v335 = vld [vmem:[%s7 + $0x18] sm:$0xff]
    %v336 = vld [vmem:[%s7 + $0x20] sm:$0xff]
    %v337 = vld [vmem:[%s7 + $0x28] sm:$0xff]
    %v338 = vld [vmem:[%s7 + $0x30] sm:$0xff]
    %v339 = vld [vmem:[%s7 + $0x38] sm:$0xff]
    %v340 = vld [vmem:[%s7 + $0x40] sm:$0xff]
    %v341 = vld [vmem:[%s7 + $0x48] sm:$0xff]
    %v342 = vld [vmem:[%s7 + $0x50] sm:$0xff]
    %v343 = vld [vmem:[%s7 + $0x58] sm:$0xff]
    %v344 = vld [vmem:[%s7 + $0x60] sm:$0xff]
    %v345 = vld [vmem:[%s7 + $0x68] sm:$0xff]
    %v346 = vld [vmem:[%s7 + $0x70] sm:$0xff]
    %v347 = vld [vmem:[%s7 + $0x78] sm:$0xff]
    %v348 = vld [vmem:[%s8] sm:$0x1]
    %v350 = vlaneseq
    %v351 = vshrl.u32 %v350, 7
    %v352 = vsub.s32 0, %v351
    %v353 = vrot.slane %v348, %v352
    %355 = vmatprep.subr.mxu0 0.0
    %356 = vmatpush1.msra.mxu0 %v332
    %357 = vmatprep.subr.mxu0 0.0
    %358 = vmatpush1.msra.mxu0 %v333
    %359 = vmatprep.subr.mxu0 0.0
    %360 = vmatpush1.msra.mxu0 %v334
    %361 = vmatprep.subr.mxu0 0.0
    %362 = vmatpush1.msra.mxu0 %v335
    %363 = vmatprep.subr.mxu0 0.0
    %364 = vmatpush1.msra.mxu0 %v336
    %365 = vmatprep.subr.mxu0 0.0
    %366 = vmatpush1.msra.mxu0 %v337
    %367 = vmatprep.subr.mxu0 0.0
    %368 = vmatpush1.msra.mxu0 %v338
    %369 = vmatprep.subr.mxu0 0.0
    %370 = vmatpush1.msra.mxu0 %v339
    %371 = vmatprep.subr.mxu0 0.0
    %372 = vmatpush1.msra.mxu0 %v340
    %373 = vmatprep.subr.mxu0 0.0
    %374 = vmatpush1.msra.mxu0 %v341
    %375 = vmatprep.subr.mxu0 0.0
    %376 = vmatpush1.msra.mxu0 %v342
    %377 = vmatprep.subr.mxu0 0.0
    %378 = vmatpush1.msra.mxu0 %v343
    %379 = vmatprep.subr.mxu0 0.0
    %380 = vmatpush1.msra.mxu0 %v344
    %381 = vmatprep.subr.mxu0 0.0
    %382 = vmatpush1.msra.mxu0 %v345
    %383 = vmatprep.subr.mxu0 0.0
    %384 = vmatpush1.msra.mxu0 %v346
    %385 = vmatprep.subr.mxu0 0.0
    %386 = vmatpush1.msra.mxu0 %v347
    %387 = vmatprep.subr.mxu0 0.0
    %388 = vmatpush1.msra.mxu0 0.0
    %389 = vmatprep.subr.mxu0 0.0
    %390 = vmatpush1.msra.mxu0 0.0
    %391 = vmatprep.subr.mxu0 0.0
    %392 = vmatpush1.msra.mxu0 0.0
    %393 = vmatprep.subr.mxu0 0.0
    %394 = vmatpush1.msra.mxu0 0.0
    %395 = vmatprep.subr.mxu0 0.0
    %396 = vmatpush1.msra.mxu0 0.0
    %397 = vmatprep.subr.mxu0 0.0
    %398 = vmatpush1.msra.mxu0 0.0
    %399 = vmatprep.subr.mxu0 0.0
    %400 = vmatpush1.msra.mxu0 0.0
    %401 = vmatprep.subr.mxu0 0.0
    %402 = vmatpush1.msra.mxu0 0.0
    %403 = vmatprep.subr.mxu0 0.0
    %404 = vmatpush1.msra.mxu0 0.0
    %405 = vmatprep.subr.mxu0 0.0
    %406 = vmatpush1.msra.mxu0 0.0
    %407 = vmatprep.subr.mxu0 0.0
    %408 = vmatpush1.msra.mxu0 0.0
    %409 = vmatprep.subr.mxu0 0.0
    %410 = vmatpush1.msra.mxu0 0.0
    %411 = vmatprep.subr.mxu0 0.0
    %412 = vmatpush1.msra.mxu0 0.0
    %413 = vmatprep.subr.mxu0 0.0
    %414 = vmatpush1.msra.mxu0 0.0
    %415 = vmatprep.subr.mxu0 0.0
    %416 = vmatpush1.msra.mxu0 0.0
    %417 = vmatprep.subr.mxu0 0.0
    %418 = vmatpush1.msra.mxu0 0.0
    %419 = vmatprep.mubr.f32.mxu0 0.0
    %420 = vmatmul.mubr.f32.gmra.mrb[0].mxu0 %v331
    %v421 = vpop.f32.mrb[0].mxu0
    %v422 = vadd.f32 %v353, %v421
    %v423 = vpop.f32.mrb[0].mxu0
    %424 = vdwg.mxu0
    %vm425 = vcmask 64512
    %426 = vst.msk [vmem:[#allocation7] sm:$0xff] %vm425, %v422
    // Predicated region
    $region46: #{tpu_custom_call.1} parent=1 // pred_check
      _
    $region47: #{tpu_custom_call.1} parent=1 // pred_check_branch
      %428 = sbr.rel (0) target = $region49
    $region48: #{tpu_custom_call.1} parent=1 // pred_region
      %s430 = ssub.s32 128, 128
      %431 = vsyncadd [#allocation4], %s430
      %s433 = sshll.u32 [#allocation7], 4
      %s434 = int_to_ptr.vmem [resolvable:$true] %s433
      %436 = dma.vmem_to_hbm [thread:$0]  %s434, 128, %s9, [#allocation4]
    $region49: #{tpu_custom_call.1} parent=1 // pred_fallthru
      _
    // Predicated region
    $region50: #{tpu_custom_call.1} parent=1 // pred_check
      _
    $region51: #{tpu_custom_call.1} parent=1 // pred_check_branch
      %438 = sbr.rel (0) target = $region53
    $region52: #{tpu_custom_call.1} parent=1 // pred_region
      %439 = dma.done [#allocation4], 128
    $region53: #{tpu_custom_call.1} parent=1 // pred_fallthru
      _
    %440 = vsyncpa [#allocation3], 1
    %441 = vsyncpa [#allocation6], 1
    %442 = vsyncpa [#allocation4], 1

</llo_original>
